<compile_context>
chip_gen: v7x
topology: tpu7x:2x2x1
jax: 0.10.0
libtpu: 0.0.40
codegen_flags: <defaults>
</compile_context>

<pallas_src>
import jax
import jax.numpy as jnp
from jax.experimental import pallas as pl
from jax.experimental.pallas import tpu as pltpu


def _apply_stats(x_ref, mean_ref, istd_ref, o_ref, norm_var):
    rb, d = x_ref.shape
    sr = mean_ref.shape[0]
    xf = x_ref[...].astype(jnp.float32)

    if sr > 1 and rb > sr:
        # Free view: each (sr, d) stats slab lines up with whole x vregs -> plain VPU ops.
        xf = xf.reshape(rb // sr, sr, d)
        y = xf - mean_ref[...]
        if norm_var:
            y = y * istd_ref[...]
        o_ref[...] = y.reshape(rb, d).astype(o_ref.dtype)
    else:
        # rb == sr (exact match) or sr == 1 (tiny single-block fallback, broadcast).
        y = xf - mean_ref[...]
        if norm_var:
            y = y * istd_ref[...]
        o_ref[...] = y.astype(o_ref.dtype)


def _cmvn_kernel_norm_var(x_ref, mean_ref, istd_ref, o_ref):
    _apply_stats(x_ref, mean_ref, istd_ref, o_ref, norm_var=True)


def _cmvn_kernel_mean_only(x_ref, mean_ref, o_ref):
    _apply_stats(x_ref, mean_ref, None, o_ref, norm_var=False)


def _round_up(v, m):
    return -(-v // m) * m


def global_cmvn(x, mean, istd, norm_var: bool = True, row_block: int | None = None):
    """Equivalent of GlobalCMVN.forward.

    Args:
      x:    (B, T, D) float array
      mean: (D,) mean stats
      istd: (D,) inverse std (1.0 / std)
      norm_var:  whether to multiply by istd
      row_block: optional override for rows-per-tile (testing / tuning)
    Returns:
      (B, T, D) normalized features, same dtype as x.
    """
    B, T, D = x.shape
    N = B * T
    out_dtype = x.dtype

    mean_f = jnp.asarray(mean).reshape(-1).astype(jnp.float32)
    istd_f = jnp.asarray(istd).reshape(-1).astype(jnp.float32)
    assert mean_f.shape[0] == D and istd_f.shape[0] == D

    # Free view: merge leading dims only (no relayout, last dim unchanged).
    x2 = x.reshape(N, D)

    # ---- tile sizing: budget in f32 (the in-kernel compute width, even for bf16 inputs) ----
    compute_itemsize = max(jnp.dtype(out_dtype).itemsize, 4)
    try:
        info = pltpu.get_tpu_info()
        vmem_cap = int(getattr(info, "vmem_capacity_bytes", 64 << 20))
    except Exception:
        vmem_cap = 64 << 20  # conservative (v7x per-core physical VMEM)
    target_tile_bytes = min(4 << 20, max(1 << 20, vmem_cap // 16))

    if N <= 8:
        rb = N  # single full-extent block (legal even if not a multiple of 8)
    else:
        if row_block is not None:
            rb = max(8, (int(row_block) // 8) * 8)
        else:
            rb = max(8, (target_tile_bytes // (D * compute_itemsize) // 8) * 8)
            # Keep >= 8 grid steps so both v7x TensorCores get work and the
            # pipeline has iterations to overlap DMA with.
            rb = min(rb, max(8, _round_up(pl.cdiv(N, 8), 8)))
        rb = min(rb, _round_up(N, 8))

    grid = (pl.cdiv(N, rb),)

    # Stats: pre-broadcast to a full 8-sublane slab (fetched once; constant index_map).
    sr = 8 if rb % 8 == 0 else 1
    mean2 = jnp.broadcast_to(mean_f.reshape(1, D), (sr, D))
    istd2 = jnp.broadcast_to(istd_f.reshape(1, D), (sr, D))

    x_spec = pl.BlockSpec((rb, D), lambda i: (i, 0))
    stat_spec = pl.BlockSpec((sr, D), lambda i: (0, 0))

    if norm_var:
        kernel = _cmvn_kernel_norm_var
        in_specs = [x_spec, stat_spec, stat_spec]
        args = (x2, mean2, istd2)
    else:
        kernel = _cmvn_kernel_mean_only
        in_specs = [x_spec, stat_spec]  # istd never DMA'd
        args = (x2, mean2)

    vmem_limit = int(min(64 << 20, max(32 << 20, (vmem_cap * 3) // 4)))

    out = pl.pallas_call(
        kernel,
        out_shape=jax.ShapeDtypeStruct((N, D), out_dtype),
        grid_spec=pltpu.PrefetchScalarGridSpec(
            num_scalar_prefetch=0,
            grid=grid,
            in_specs=in_specs,
            out_specs=x_spec,
        ),
        compiler_params=pltpu.CompilerParams(
            dimension_semantics=("parallel",),
            vmem_limit_bytes=vmem_limit,
        ),
    )(*args)

    # Free view: split leading dim back out.
    return out.reshape(B, T, D)


if __name__ == "__main__":
    key = jax.random.PRNGKey(0)
    k_x, k_mean, k_std = jax.random.split(key, 3)

    # Typical speech layout: feat_dim=80 (not a multiple of 128 -> lane-masked stores).
    B, T, D = 2, 8, 80
    x = jax.random.normal(k_x, (B, T, D), dtype=jnp.float32)
    mean = jax.random.normal(k_mean, (D,), dtype=jnp.float32)
    std = jax.random.uniform(k_std, (D,), dtype=jnp.float32, minval=0.5, maxval=2.0)
    istd = 1.0 / std

    # norm_var=True path (auto tile sizing; grid of 2 here).
    out = jax.block_until_ready(global_cmvn(x, mean, istd, norm_var=True))
    ref = (x - mean) * istd
    assert jnp.allclose(out, ref, atol=1e-6, rtol=1e-6), "mismatch vs reference (norm_var=True)"

    # norm_var=False path (mean-only kernel, no istd input).
    out2 = jax.block_until_ready(global_cmvn(x, mean, istd, norm_var=False))
    assert jnp.allclose(out2, x - mean, atol=1e-6, rtol=1e-6), "mismatch (norm_var=False)"

    # Multi-block + non-divisible last block (N=123, rb=8 -> grid=16, masked tail writes).
    B2, T2 = 3, 41
    x3 = jax.random.normal(jax.random.PRNGKey(1), (B2, T2, D), dtype=jnp.float32)
    ref3 = (x3 - mean) * istd
    out3 = jax.block_until_ready(global_cmvn(x3, mean, istd, norm_var=True, row_block=8))
    assert jnp.allclose(out3, ref3, atol=1e-6, rtol=1e-6), "mismatch (multi-block / masked tail)"

    # rb > 8 path (exercises the (rb//8, 8, D) stats view) with a partial last block.
    out3b = jax.block_until_ready(global_cmvn(x3, mean, istd, norm_var=True, row_block=16))
    assert jnp.allclose(out3b, ref3, atol=1e-6, rtol=1e-6), "mismatch (rb=16 / stats view)"

    # Tiny single-block fallback (N=5 < 8, full-extent row block, sr=1 broadcast path).
    x5 = jax.random.normal(jax.random.PRNGKey(2), (1, 5, D), dtype=jnp.float32)
    out5 = jax.block_until_ready(global_cmvn(x5, mean, istd, norm_var=True))
    assert jnp.allclose(out5, (x5 - mean) * istd, atol=1e-6, rtol=1e-6), "mismatch (tiny N)"

    # bf16 input: stats stay f32, math in f32, only the output is cast.
    xb = x.astype(jnp.bfloat16)
    out4 = jax.block_until_ready(global_cmvn(xb, mean, istd, norm_var=True))
    ref4 = ((xb.astype(jnp.float32) - mean) * istd).astype(jnp.bfloat16)
    assert jnp.allclose(out4.astype(jnp.float32), ref4.astype(jnp.float32),
                        atol=2e-2, rtol=2e-2), "mismatch (bf16)"

    print("KERNEL_OK")
</pallas_src>

<mosaic_0001>
module attributes {stable_mosaic.version = 11 : i64} {
  func.func @_cmvn_kernel_norm_var(%arg0: i32, %arg1: memref<8x80xf32, #tpu.memory_space<vmem>>, %arg2: memref<8x80xf32, #tpu.memory_space<vmem>>, %arg3: memref<8x80xf32, #tpu.memory_space<vmem>>, %arg4: memref<8x80xf32, #tpu.memory_space<vmem>>) attributes {dimension_semantics = [#tpu.dimension_semantics<parallel>], iteration_bounds = array<i64: 2>, scalar_prefetch = 0 : i64, scratch_operands = 0 : i64, tpu.core_type = #tpu.core_type<tc>, window_params = [{transform_indices = @transform_0, window_bounds = array<i64: 8, 80>}, {pipeline_mode = #tpu.pipeline_mode<synchronous>, transform_indices = @transform_1, window_bounds = array<i64: 8, 80>}, {pipeline_mode = #tpu.pipeline_mode<synchronous>, transform_indices = @transform_2, window_bounds = array<i64: 8, 80>}, {transform_indices = @transform_3, window_bounds = array<i64: 8, 80>}]} {
    %c0 = arith.constant 0 : index
    %c0_0 = arith.constant 0 : index
    %0 = vector.load %arg1[%c0, %c0_0] : memref<8x80xf32, #tpu.memory_space<vmem>>, vector<8x80xf32>
    %c0_1 = arith.constant 0 : index
    %c0_2 = arith.constant 0 : index
    %1 = vector.load %arg2[%c0_1, %c0_2] : memref<8x80xf32, #tpu.memory_space<vmem>>, vector<8x80xf32>
    %2 = arith.subf %0, %1 : vector<8x80xf32>
    %c0_3 = arith.constant 0 : index
    %c0_4 = arith.constant 0 : index
    %3 = vector.load %arg3[%c0_3, %c0_4] : memref<8x80xf32, #tpu.memory_space<vmem>>, vector<8x80xf32>
    %4 = arith.mulf %2, %3 : vector<8x80xf32>
    %c0_5 = arith.constant 0 : index
    %c0_6 = arith.constant 0 : index
    %5 = vector.load %arg4[%c0_5, %c0_6] : memref<8x80xf32, #tpu.memory_space<vmem>>, vector<8x80xf32>
    tpu.vector_store %arg4[%c0_5, %c0_6], %4 {strides = array<i32>} : memref<8x80xf32, #tpu.memory_space<vmem>>, vector<8x80xf32>,
    return
  }
  func.func @transform_0(%arg0: i32) -> (i32, i32) {
    %c0_i32 = arith.constant 0 : i32
    %c0_i32_0 = arith.constant 0 : i32
    return %arg0, %c0_i32 : i32, i32
  }
  func.func @transform_1(%arg0: i32) -> (i32, i32) {
    %c0_i32 = arith.constant 0 : i32
    %c0_i32_0 = arith.constant 0 : i32
    %c0_i32_1 = arith.constant 0 : i32
    return %c0_i32, %c0_i32_0 : i32, i32
  }
  func.func @transform_2(%arg0: i32) -> (i32, i32) {
    %c0_i32 = arith.constant 0 : i32
    %c0_i32_0 = arith.constant 0 : i32
    %c0_i32_1 = arith.constant 0 : i32
    return %c0_i32, %c0_i32_0 : i32, i32
  }
  func.func @transform_3(%arg0: i32) -> (i32, i32) {
    %c0_i32 = arith.constant 0 : i32
    %c0_i32_0 = arith.constant 0 : i32
    return %arg0, %c0_i32 : i32, i32
  }
}

</mosaic_0001>

<llo_original>
// kernel: tpu_custom_call.1
$region0: #{tpu_custom_call.1}
  #allocation0 [shape = 'u32[]', space=smem, size = 0x4, offset = 0x4, fixed_abs, tag = 'smem constant byte address 0x4 - core index']
  #allocation1 [shape = 'u32[144,128]{1,0:T(1,128)}', space=vmem, size = 0x12000, scoped, tag = 'internal scratch']
  %s0 = inlined_call_operand.hbm [shape: f32[16,80], index: 0, kind: input, shape index: {}]
  %s1 = inlined_call_operand.hbm [shape: f32[8,80], index: 1, kind: input, shape index: {}]
  %s2 = inlined_call_operand.hbm [shape: f32[8,80], index: 2, kind: input, shape index: {}]
  %s3 = inlined_call_operand.hbm [shape: f32[16,80], index: 3, kind: output, shape index: {}]
  %s4 = sld [smem:[#allocation0]]
  $region57: #{tpu_custom_call.1} parent=0
    _
  %s6 = ssub.s32 1, %s4
  %s7 = scalar_select 0, %s6, %s4
  $region1: #{tpu_custom_call.1} parent=0
    #allocation2 [shape = 'u8[8192]{0}', space=vmem, size = 0x2000, scoped, tag = 'input window, operand 0']
    #allocation3 [shape = 's32[2]{0}', space=sflag, size = 0x8, scoped, tag = 'scoped memory for tpu_custom_call.1']
    #allocation4 [shape = 's32[2]{0}', space=sflag, size = 0x8, scoped, tag = 'scoped memory for tpu_custom_call.1']
    #allocation5 [shape = 'u8[4096]{0}', space=vmem, size = 0x1000, scoped, tag = 'input window, operand 1, single buffered']
    #allocation6 [shape = 's32[1]{0}', space=sflag, size = 0x4, scoped, tag = 'scoped memory for tpu_custom_call.1']
    #allocation7 [shape = 'u8[4096]{0}', space=vmem, size = 0x1000, scoped, tag = 'input window, operand 2, single buffered']
    #allocation8 [shape = 'u8[8192]{0}', space=vmem, size = 0x2000, scoped, tag = 'output window, operand 0']
    %8 = vsyncpa [#allocation3], 0
    %s9 = scalar_lea.sflag [#allocation3], 1
    %10 = vsyncpa %s9, 0
    %11 = vsyncpa [#allocation6], 0
    %12 = vsyncpa [#allocation4], 0
    %s13 = scalar_lea.sflag [#allocation4], 1
    %14 = vsyncpa %s13, 0
    loop: start=0, step=1, limit=4
    $region2: #{tpu_custom_call.1} parent=1 // loop_pre_header
      _
    $region3: #{tpu_custom_call.1} parent=1 // loop_header
      %s16 = sphi 0, %s20
      %p17 = scmp.ge.s32.totalorder %s16, 4
      %s26 = sphi 0, %s28
      %s29 = sphi 0, %s26
      %s30 = sphi 0, %s29
      %s46 = sphi 0, %s30
      %s50 = sphi 0, %s50
      %s52 = sphi 0, %s50
      %s53 = sphi 0, %s52
      %s67 = sphi 0, %s53
      %s71 = sphi 0, %s71
      %s73 = sphi 0, %s71
      %s74 = sphi 0, %s73
      %s88 = sphi 0, %s74
      %s94 = sphi 0, %s96
      %s97 = sphi 0, %s94
      %s98 = sphi 0, %s97
      %s114 = sphi 0, %s98
    $region4: #{tpu_custom_call.1} parent=1 // loop_header_branch
      %19 = sbr.rel (%p17) target = $region8
    $region5: #{tpu_custom_call.1} parent=1 // loop_body
      %s21 = ssub.s32 %s16, 1
      %s22 = ssub.s32 %s16, 2
      %s23 = sadd.s32 %s16, 1
      %s24 = ssub.s32 %s16, %s23
      %p25 = scmp.eq.s32.totalorder %s24, 0
      %s27 = sadd.s32 %s26, 1
      %s28 = scalar_select %p25, %s26, %s27
      %p31 = pneg %p25
      %p32 = scmp.eq.s32.totalorder %s16, 1
      %p33 = por %p31, %p32
      %p34 = scmp.ne.s32.totalorder %s26, %s29
      %p35 = scmp.eq.s32.totalorder %s16, 0
      %p36 = por %p34, %p35
      %p37 = scmp.ne.s32.totalorder %s26, %s29
      %p38 = scmp.eq.s32.totalorder %s21, 1
      %p39 = por %p37, %p38
      %p40 = scmp.ne.s32.totalorder %s29, %s30
      %p41 = scmp.eq.s32.totalorder %s21, 0
      %p42 = por %p40, %p41
      %p43 = scmp.ne.s32.totalorder %s29, %s30
      %p44 = scmp.eq.s32.totalorder %s22, 1
      %p45 = por %p43, %p44
      %p47 = scmp.ne.s32.totalorder %s30, %s46
      %p48 = scmp.eq.s32.totalorder %s22, 0
      %p49 = por %p47, %p48
      %s51 = sadd.s32 %s50, 1
      %p54 = scmp.eq.s32.totalorder %s16, 1
      %p55 = scmp.ne.s32.totalorder %s50, %s52
      %p56 = scmp.eq.s32.totalorder %s16, 0
      %p57 = por %p55, %p56
      %p58 = scmp.ne.s32.totalorder %s50, %s52
      %p59 = scmp.eq.s32.totalorder %s21, 1
      %p60 = por %p58, %p59
      %p61 = scmp.ne.s32.totalorder %s52, %s53
      %p62 = scmp.eq.s32.totalorder %s21, 0
      %p63 = por %p61, %p62
      %p64 = scmp.ne.s32.totalorder %s52, %s53
      %p65 = scmp.eq.s32.totalorder %s22, 1
      %p66 = por %p64, %p65
      %p68 = scmp.ne.s32.totalorder %s53, %s67
      %p69 = scmp.eq.s32.totalorder %s22, 0
      %p70 = por %p68, %p69
      %s72 = sadd.s32 %s71, 1
      %p75 = scmp.eq.s32.totalorder %s16, 1
      %p76 = scmp.ne.s32.totalorder %s71, %s73
      %p77 = scmp.eq.s32.totalorder %s16, 0
      %p78 = por %p76, %p77
      %p79 = scmp.ne.s32.totalorder %s71, %s73
      %p80 = scmp.eq.s32.totalorder %s21, 1
      %p81 = por %p79, %p80
      %p82 = scmp.ne.s32.totalorder %s73, %s74
      %p83 = scmp.eq.s32.totalorder %s21, 0
      %p84 = por %p82, %p83
      %p85 = scmp.ne.s32.totalorder %s73, %s74
      %p86 = scmp.eq.s32.totalorder %s22, 1
      %p87 = por %p85, %p86
      %p89 = scmp.ne.s32.totalorder %s74, %s88
      %p90 = scmp.eq.s32.totalorder %s22, 0
      %p91 = por %p89, %p90
      %s92 = ssub.s32 %s16, %s23
      %p93 = scmp.eq.s32.totalorder %s92, 0
      %s95 = sadd.s32 %s94, 1
      %s96 = scalar_select %p93, %s94, %s95
      %p99 = pneg %p93
      %p100 = scmp.eq.s32.totalorder %s16, 1
      %p101 = por %p99, %p100
      %p102 = scmp.ne.s32.totalorder %s94, %s97
      %p103 = scmp.eq.s32.totalorder %s16, 0
      %p104 = por %p102, %p103
      %p105 = scmp.ne.s32.totalorder %s94, %s97
      %p106 = scmp.eq.s32.totalorder %s21, 1
      %p107 = por %p105, %p106
      %p108 = scmp.ne.s32.totalorder %s97, %s98
      %p109 = scmp.eq.s32.totalorder %s21, 0
      %p110 = por %p108, %p109
      %p111 = scmp.ne.s32.totalorder %s97, %s98
      %p112 = scmp.eq.s32.totalorder %s22, 1
      %p113 = por %p111, %p112
      %p115 = scmp.ne.s32.totalorder %s98, %s114
      %p116 = scmp.eq.s32.totalorder %s22, 0
      %p117 = por %p115, %p116
      %p118 = scmp.le.s32.totalorder 1, %s16
      %p119 = scmp.lt.s32.totalorder %s16, 3
      %p120 = pnand %p118, %p119
      %p121 = pneg %p120
      // Predicated region
      $region9: #{tpu_custom_call.1} parent=5 // pred_check
        _
      $region10: #{tpu_custom_call.1} parent=5 // pred_check_branch
        %123 = sbr.rel (%p120) target = $region12
      $region11: #{tpu_custom_call.1} parent=5 // pred_region
        %s124 = ssub.s32 %s16, 1
        // Predicated region
        $region13: #{tpu_custom_call.1} parent=11 // pred_check
          %p125 = pneg %p63
        $region14: #{tpu_custom_call.1} parent=11 // pred_check_branch
          %127 = sbr.rel (%p125) target = $region16
        $region15: #{tpu_custom_call.1} parent=11 // pred_region
          %s129 = ssub.s32 128, 128
          %130 = vsyncadd [#allocation6], %s129
          %s132 = sshll.u32 [#allocation5], 4
          %s133 = int_to_ptr.vmem [resolvable:$true] %s132
          %135 = dma.hbm_to_vmem [thread:$0]  %s1, 128, %s133, [#allocation6]
        $region16: #{tpu_custom_call.1} parent=11 // pred_fallthru
          _
        // Predicated region
        $region17: #{tpu_custom_call.1} parent=11 // pred_check
          %p136 = pneg %p84
        $region18: #{tpu_custom_call.1} parent=11 // pred_check_branch
          %138 = sbr.rel (%p136) target = $region20
        $region19: #{tpu_custom_call.1} parent=11 // pred_region
          %s140 = ssub.s32 128, 128
          %141 = vsyncadd [#allocation6], %s140
          %s143 = sshll.u32 [#allocation7], 4
          %s144 = int_to_ptr.vmem [resolvable:$true] %s143
          %146 = dma.hbm_to_vmem [thread:$0]  %s2, 128, %s144, [#allocation6]
        $region20: #{tpu_custom_call.1} parent=11 // pred_fallthru
          _
      $region12: #{tpu_custom_call.1} parent=5 // pred_fallthru
        _
      %p147 = scmp.lt.s32.totalorder %s16, 2
      // Predicated region
      $region21: #{tpu_custom_call.1} parent=5 // pred_check
        %p148 = pneg %p147
      $region22: #{tpu_custom_call.1} parent=5 // pred_check_branch
        %150 = sbr.rel (%p148) target = $region24
      $region23: #{tpu_custom_call.1} parent=5 // pred_region
        // Predicated region
        $region25: #{tpu_custom_call.1} parent=23 // pred_check
          %p151 = pneg %p36
        $region26: #{tpu_custom_call.1} parent=23 // pred_check_branch
          %153 = sbr.rel (%p151) target = $region28
        $region27: #{tpu_custom_call.1} parent=23 // pred_region
          %s154 = sand.u32 %s26, 1
          %s155 = scalar_lea.sflag [#allocation3], %s154
          %s156 = sand.u32 %s26, 1
          %s157 = smul.addr %s156, 8
          %s158 = scalar_lea.vmem [#allocation2], %s157
          %s160 = ssub.s32 128, 128
          %161 = vsyncadd %s155, %s160
          %s162 = smul.addr %s16, 128
          %s163 = scalar_lea.hbm %s0, %s162
          %s165 = sshll.u32 %s158, 4
          %s166 = int_to_ptr.vmem [resolvable:$true] %s165
          %168 = dma.hbm_to_vmem [thread:$0]  %s163, 128, %s166, %s155
        $region28: #{tpu_custom_call.1} parent=23 // pred_fallthru
          _
      $region24: #{tpu_custom_call.1} parent=5 // pred_fallthru
        _
      %p169 = scmp.le.s32.totalorder 1, %s16
      %p170 = scmp.lt.s32.totalorder %s16, 3
      %p171 = pnand %p169, %p170
      %p172 = pneg %p171
      // Predicated region
      $region29: #{tpu_custom_call.1} parent=5 // pred_check
        _
      $region30: #{tpu_custom_call.1} parent=5 // pred_check_branch
        %174 = sbr.rel (%p171) target = $region32
      $region31: #{tpu_custom_call.1} parent=5 // pred_region
        %s175 = ssub.s32 %s16, 1
        %s176 = sand.u32 %s29, 1
        %s177 = scalar_lea.sflag [#allocation3], %s176
        %s178 = sand.u32 %s29, 1
        %s179 = smul.addr %s178, 8
        %s180 = scalar_lea.vmem [#allocation2], %s179
        // Predicated region
        $region33: #{tpu_custom_call.1} parent=31 // pred_check
          %p181 = pneg %p42
        $region34: #{tpu_custom_call.1} parent=31 // pred_check_branch
          %183 = sbr.rel (%p181) target = $region36
        $region35: #{tpu_custom_call.1} parent=31 // pred_region
          %184 = dma.done %s177, 128
        $region36: #{tpu_custom_call.1} parent=31 // pred_fallthru
          _
        // Predicated region
        $region37: #{tpu_custom_call.1} parent=31 // pred_check
          %p185 = pneg %p63
        $region38: #{tpu_custom_call.1} parent=31 // pred_check_branch
          %187 = sbr.rel (%p185) target = $region40
        $region39: #{tpu_custom_call.1} parent=31 // pred_region
          %188 = dma.done [#allocation6], 128
        $region40: #{tpu_custom_call.1} parent=31 // pred_fallthru
          _
        // Predicated region
        $region41: #{tpu_custom_call.1} parent=31 // pred_check
          %p189 = pneg %p84
        $region42: #{tpu_custom_call.1} parent=31 // pred_check_branch
          %191 = sbr.rel (%p189) target = $region44
        $region43: #{tpu_custom_call.1} parent=31 // pred_region
          %192 = dma.done [#allocation6], 128
        $region44: #{tpu_custom_call.1} parent=31 // pred_fallthru
          _
        %s193 = sand.u32 %s29, 1
        %s194 = scalar_lea.sflag [#allocation3], %s193
        %s195 = sand.u32 %s29, 1
        %s196 = smul.addr %s195, 8
        %s197 = scalar_lea.vmem [#allocation2], %s196
        %p198 = pneg %p42
        %p199 = pneg %p39
        %p200 = pneg %p63
        %p201 = pneg %p60
        %p202 = pneg %p84
        %p203 = pneg %p81
        %p204 = pneg %p110
        %p205 = pneg %p107
        %s206 = sand.u32 %s97, 1
        %s207 = scalar_lea.sflag [#allocation4], %s206
        %s208 = sand.u32 %s97, 1
        %s209 = smul.addr %s208, 8
        %s210 = scalar_lea.vmem [#allocation8], %s209
        %v211 = vld [vmem:[%s180] sm:$0xff]
        %v212 = vld [vmem:[#allocation5] sm:$0xff]
        %v213 = vsub.f32 %v211, %v212
        %v214 = vld [vmem:[#allocation7] sm:$0xff]
        %v215 = vmul.f32 %v213, %v214
        %vm216 = vcmask 654336
        %217 = vst.msk [vmem:[%s210] sm:$0xff] %vm216, %v215
        %s218 = sand.u32 %s97, 1
        %s219 = scalar_lea.sflag [#allocation4], %s218
        %s220 = sand.u32 %s97, 1
        %s221 = smul.addr %s220, 8
        %s222 = scalar_lea.vmem [#allocation8], %s221
        // Predicated region
        $region45: #{tpu_custom_call.1} parent=31 // pred_check
          %p223 = pneg %p107
        $region46: #{tpu_custom_call.1} parent=31 // pred_check_branch
          %225 = sbr.rel (%p223) target = $region48
        $region47: #{tpu_custom_call.1} parent=31 // pred_region
          %s227 = ssub.s32 128, 128
          %228 = vsyncadd %s219, %s227
          %s229 = smul.addr %s21, 128
          %s230 = scalar_lea.hbm %s3, %s229
          %s232 = sshll.u32 %s222, 4
          %s233 = int_to_ptr.vmem [resolvable:$true] %s232
          %235 = dma.vmem_to_hbm [thread:$0]  %s233, 128, %s230, %s219
        $region48: #{tpu_custom_call.1} parent=31 // pred_fallthru
          _
      $region32: #{tpu_custom_call.1} parent=5 // pred_fallthru
        _
      %p236 = scmp.le.s32.totalorder 2, %s16
      // Predicated region
      $region49: #{tpu_custom_call.1} parent=5 // pred_check
        %p237 = pneg %p236
      $region50: #{tpu_custom_call.1} parent=5 // pred_check_branch
        %239 = sbr.rel (%p237) target = $region52
      $region51: #{tpu_custom_call.1} parent=5 // pred_region
        %s240 = ssub.s32 %s16, 2
        // Predicated region
        $region53: #{tpu_custom_call.1} parent=51 // pred_check
          %p241 = pneg %p113
        $region54: #{tpu_custom_call.1} parent=51 // pred_check_branch
          %243 = sbr.rel (%p241) target = $region56
        $region55: #{tpu_custom_call.1} parent=51 // pred_region
          %s244 = sand.u32 %s98, 1
          %s245 = scalar_lea.sflag [#allocation4], %s244
          %s246 = sand.u32 %s98, 1
          %s247 = smul.addr %s246, 8
          %s248 = scalar_lea.vmem [#allocation8], %s247
          %249 = dma.done %s245, 128
        $region56: #{tpu_custom_call.1} parent=51 // pred_fallthru
          _
      $region52: #{tpu_custom_call.1} parent=5 // pred_fallthru
        _
    $region6: #{tpu_custom_call.1} parent=1 // loop_footer
      %s20 = sadd.s32 1, %s16
    $region7: #{tpu_custom_call.1} parent=1 // loop_footer_branch
      %15 = sbr.rel target = $region3
    $region8: #{tpu_custom_call.1} parent=1 // loop_exit
      _
    %250 = vsyncpa [#allocation3], 1
    %s251 = scalar_lea.sflag [#allocation3], 1
    %252 = vsyncpa %s251, 1
    %253 = vsyncpa [#allocation6], 1
    %254 = vsyncpa [#allocation4], 1
    %s255 = scalar_lea.sflag [#allocation4], 1
    %256 = vsyncpa %s255, 1

</llo_original>
